<compile_context>
chip_gen: v5e
topology: v5e:2x2
jax: 0.10.0
libtpu: 0.0.40
codegen_flags: <defaults>
</compile_context>

<pallas_src>
import functools

import jax
import jax.numpy as jnp
from jax.experimental import pallas as pl
from jax.experimental.pallas import tpu as pltpu


# ---------------------------------------------------------------------------
# Kernels
# ---------------------------------------------------------------------------
def _deletion_kernel(x_ref, w_ref, m_ref, o_ref, *, precision):
    # x_ref: (tm, dim) row tile;  w_ref: (dim, dim) resident weight;
    # m_ref: (tm, 1) int32 mask tile (nonzero => apply the deletion operator).
    x = x_ref[...]
    y = jnp.dot(x, w_ref[...], preferred_element_type=jnp.float32,
                precision=precision)
    o_ref[...] = jnp.where(m_ref[...] != 0, y.astype(o_ref.dtype), x)


def _deletion_kernel_sparse(tiles_ref, x_ref, w_ref, m_ref, o_ref, *, precision):
    del tiles_ref  # only consumed by the index_maps
    _deletion_kernel(x_ref, w_ref, m_ref, o_ref, precision=precision)


# ---------------------------------------------------------------------------
# Generation-aware policy helpers
# ---------------------------------------------------------------------------
def _round_up_to(v, m):
    return ((v + m - 1) // m) * m


def _tpu_vmem_budget_bytes():
    """Usable scoped-VMEM budget, generation-aware with a safe fallback."""
    cap = 64 << 20                                  # conservative (v7x per-TC)
    try:
        cap = int(pltpu.get_tpu_info().vmem_capacity_bytes)
    except Exception:
        pass
    # Leave headroom for Mosaic internal scratch; ~38 MiB on v7x (64 MiB VMEM),
    # 48 MiB on v5e/v6e (128 MiB VMEM).
    return int(min(48 << 20, cap * 6 // 10))


def _has_two_tensorcores():
    """True on chips exposing 2 TensorCores behind one device (v4/v5p/v7x)."""
    try:
        kind = jax.devices()[0].device_kind.lower()
    except Exception:
        return False
    if "v7" in kind or "7x" in kind or "v4" in kind:
        return True
    # v5p is dual-core; v5e ("v5 lite"/"v5e") and v6e are single-core.
    return "v5" in kind and "lite" not in kind and "5e" not in kind


def _tile_footprint_bytes(tm, dim, itemsize):
    # x + out tiles double-buffered; (tm,1) int32 mask lane-pads to (tm,128)
    # and is double-buffered; (dim,dim) weight single-buffered.
    return 4 * tm * dim * itemsize + 2 * tm * 128 * 4 + dim * dim * itemsize


def _pick_tm(n, dim, itemsize, multi_tc, vmem_budget, target=2048):
    """Row-tile size: big tiles amortize the ~0.35us/step pipeline overhead;
    dual-TC chips get an even, balanced >=2-step grid; single-TC chips get
    one block when the whole array fits."""
    if n <= 16:
        return n
    steps = pl.cdiv(n, target)
    if multi_tc:
        steps = max(2, steps + (steps % 2))         # even -> both TCs get equal work
    if steps <= 1:
        tm = n                                      # single full-array block
    else:
        tm = min(_round_up_to(pl.cdiv(n, steps), 8),
                 _round_up_to(min(target, n), 8))
        tm = max(8, tm)
    # Shrink if the pipelined tile footprint would blow the VMEM budget.
    while tm > 8 and _tile_footprint_bytes(tm, dim, itemsize) > vmem_budget:
        tm = max(8, ((tm // 2) // 8) * 8)
    return tm


# ---------------------------------------------------------------------------
# Forward pass
# ---------------------------------------------------------------------------
def deletion_layer(x, deletion_weight, mask=None, *, tm=None,
                   skip_unmasked_tiles=True, precision=None):
    """Pallas TPU forward for DeletionLayer.

    x: (N, dim) features, deletion_weight: (dim, dim), mask: (N,) bool or None
    (None -> identity, as in the PyTorch module).

    The output aliases x.  For a true in-place update (no defensive copy of x)
    donate x at the jit boundary, e.g. jax.jit(deletion_layer, donate_argnums=0),
    and do not reuse x afterwards.

    precision: forwarded to the matmul (pass jax.lax.Precision.HIGHEST for
    bit-closeness to PyTorch fp32; essentially free since the op is HBM-bound).
    """
    if mask is None:
        return x

    N, dim = x.shape
    assert deletion_weight.shape == (dim, dim)
    assert mask.shape == (N,)

    itemsize = jnp.dtype(x.dtype).itemsize
    vmem_budget = _tpu_vmem_budget_bytes()
    multi_tc = _has_two_tensorcores()
    if tm is None:
        tm = _pick_tm(N, dim, itemsize, multi_tc, vmem_budget)
    num_tiles = pl.cdiv(N, tm)

    mask_i32 = mask.astype(jnp.int32).reshape(N, 1)

    vmem_need = _tile_footprint_bytes(tm, dim, itemsize)
    vmem_limit = int(min(max(vmem_need + (4 << 20), 16 << 20), vmem_budget))

    if not skip_unmasked_tiles:
        # Dense path: visit every row tile; 1-D parallel grid (megacore-split
        # on dual-TC chips).
        return pl.pallas_call(
            functools.partial(_deletion_kernel, precision=precision),
            out_shape=jax.ShapeDtypeStruct((N, dim), x.dtype),
            grid_spec=pltpu.PrefetchScalarGridSpec(
                num_scalar_prefetch=0,
                grid=(num_tiles,),
                in_specs=[
                    pl.BlockSpec((tm, dim), lambda i: (i, 0)),       # x row tile
                    pl.BlockSpec((dim, dim), lambda i: (0, 0),       # constant W
                                 pipeline_mode=pl.Buffered(1)),
                    pl.BlockSpec((tm, 1), lambda i: (i, 0)),         # mask tile
                ],
                out_specs=pl.BlockSpec((tm, dim), lambda i: (i, 0)),
            ),
            compiler_params=pltpu.CompilerParams(
                dimension_semantics=("parallel",),
                vmem_limit_bytes=vmem_limit,
            ),
            input_output_aliases={0: 0},
        )(x, deletion_weight, mask_i32)

    # Block-sparse path: compacted list of tiles containing >=1 masked row.
    # Trailing entries repeat the last active tile so the pipeline sees
    # duplicate block indices and skips their DMA entirely; tiles that are
    # never visited keep x's values because the output aliases x.
    padded = num_tiles * tm
    mask_tiles = jnp.zeros((padded,), dtype=bool).at[:N].set(mask)
    has = mask_tiles.reshape(num_tiles, tm).any(axis=1)
    tile_ids = jnp.arange(num_tiles, dtype=jnp.int32)
    order = jnp.argsort(jnp.where(has, tile_ids, tile_ids + num_tiles))
    order = order.astype(jnp.int32)
    count = has.sum()
    pad_val = order[jnp.maximum(count - 1, 0)]       # repeat last active tile (or 0)
    active_tiles = jnp.where(tile_ids < count, order, pad_val).astype(jnp.int32)

    return pl.pallas_call(
        functools.partial(_deletion_kernel_sparse, precision=precision),
        out_shape=jax.ShapeDtypeStruct((N, dim), x.dtype),
        grid_spec=pltpu.PrefetchScalarGridSpec(
            num_scalar_prefetch=1,                   # active_tiles -> SMEM
            grid=(num_tiles,),
            in_specs=[
                pl.BlockSpec((tm, dim), lambda i, tiles: (tiles[i], 0)),
                pl.BlockSpec((dim, dim), lambda i, tiles: (0, 0),
                             pipeline_mode=pl.Buffered(1)),
                pl.BlockSpec((tm, 1), lambda i, tiles: (tiles[i], 0)),
            ],
            out_specs=pl.BlockSpec((tm, dim), lambda i, tiles: (tiles[i], 0)),
        ),
        compiler_params=pltpu.CompilerParams(
            # Padded duplicate block indices may re-write one tile (with
            # identical data); keep this axis serial rather than claiming a
            # megacore-parallel split.  For dense masks on dual-TC chips use
            # skip_unmasked_tiles=False to get the parallel dense path.
            dimension_semantics=("arbitrary",),
            vmem_limit_bytes=vmem_limit,
        ),
        # Arg 0 is the scalar-prefetch tile table, so x is input index 1.
        input_output_aliases={1: 0},
    )(active_tiles, x, deletion_weight, mask_i32)
    # TODO(synk): for very sparse masks with huge N, also shrink tm so the
    # skip granularity (one tile per masked row cluster) stays fine-grained.


# ---------------------------------------------------------------------------
# Self-test
# ---------------------------------------------------------------------------
if __name__ == "__main__":
    key = jax.random.PRNGKey(0)
    kx, km = jax.random.split(key)

    dim = 128
    # nn.Parameter(torch.ones(dim, dim)) -> deterministic ones init
    deletion_weight = jnp.ones((dim, dim), dtype=jnp.float32)

    def reference(x, w, mask):
        return jnp.where(mask[:, None], x @ w, x)

    # 1) dense path
    N = 128
    x = jax.random.normal(kx, (N, dim), dtype=jnp.float32)
    mask = jax.random.bernoulli(km, p=0.3, shape=(N,))
    ref = reference(x, deletion_weight, mask)
    out = jax.block_until_ready(
        deletion_layer(x, deletion_weight, mask, skip_unmasked_tiles=False))
    assert jnp.allclose(out, ref, atol=1e-3, rtol=1e-3), "dense path mismatch"

    # 2) tile-skip path on the same inputs
    out = jax.block_until_ready(deletion_layer(x, deletion_weight, mask))
    assert jnp.allclose(out, ref, atol=1e-3, rtol=1e-3), "skip path mismatch"

    # 3) ragged N (partial last tile) with a forced multi-tile grid
    N2 = 120
    x2 = jax.random.normal(jax.random.PRNGKey(1), (N2, dim), dtype=jnp.float32)
    mask2 = jax.random.bernoulli(jax.random.PRNGKey(2), p=0.3, shape=(N2,))
    ref2 = reference(x2, deletion_weight, mask2)
    out2 = jax.block_until_ready(deletion_layer(x2, deletion_weight, mask2, tm=32))
    assert jnp.allclose(out2, ref2, atol=1e-3, rtol=1e-3), "ragged-N mismatch"

    # 4) block-sparse mask: only tile 1 (rows 128..143) is active; untouched
    #    tiles must keep x via the output<-x alias (their DMA is skipped).
    N3 = 512
    x3 = jax.random.normal(jax.random.PRNGKey(3), (N3, dim), dtype=jnp.float32)
    mask3 = jnp.zeros((N3,), dtype=bool).at[128:144].set(True)
    ref3 = reference(x3, deletion_weight, mask3)
    out3 = jax.block_until_ready(deletion_layer(x3, deletion_weight, mask3, tm=128))
    assert jnp.allclose(out3, ref3, atol=1e-3, rtol=1e-3), "block-sparse mismatch"

    # 5) all-clear mask and mask=None are both exact identity
    mask0 = jnp.zeros((N3,), dtype=bool)
    out0 = jax.block_until_ready(deletion_layer(x3, deletion_weight, mask0, tm=128))
    assert jnp.array_equal(out0, x3), "all-clear mask mismatch"
    assert deletion_layer(x3, deletion_weight, None) is x3

    # 6) recommended production call: jit with x donated so the output truly
    #    aliases x (no defensive copy, ~33% less HBM traffic).
    x4 = jax.random.normal(jax.random.PRNGKey(4), (N, dim), dtype=jnp.float32)
    mask4 = jax.random.bernoulli(jax.random.PRNGKey(5), p=0.3, shape=(N,))
    ref4 = reference(x4, deletion_weight, mask4)
    donated = jax.jit(deletion_layer, donate_argnums=0)
    out4 = jax.block_until_ready(donated(x4, deletion_weight, mask4))
    assert jnp.allclose(out4, ref4, atol=1e-3, rtol=1e-3), "donated-jit mismatch"

    print("KERNEL_OK")
</pallas_src>

<mosaic_0001>
module attributes {stable_mosaic.version = 11 : i64} {
  func.func @_deletion_kernel(%arg0: i32, %arg1: memref<128x128xf32, #tpu.memory_space<vmem>>, %arg2: memref<128x128xf32, #tpu.memory_space<vmem>>, %arg3: memref<128x1xi32, #tpu.memory_space<vmem>>, %arg4: memref<128x128xf32, #tpu.memory_space<vmem>>) attributes {dimension_semantics = [#tpu.dimension_semantics<parallel>], iteration_bounds = array<i64: 1>, scalar_prefetch = 0 : i64, scratch_operands = 0 : i64, tpu.core_type = #tpu.core_type<tc>, window_params = [{transform_indices = @transform_0, window_bounds = array<i64: 128, 128>}, {pipeline_mode = #tpu.pipeline_mode<synchronous>, transform_indices = @transform_1, window_bounds = array<i64: 128, 128>}, {transform_indices = @transform_2, window_bounds = array<i64: 128, 1>}, {transform_indices = @transform_3, window_bounds = array<i64: 128, 128>}]} {
    %c0 = arith.constant 0 : index
    %c0_0 = arith.constant 0 : index
    %0 = vector.load %arg1[%c0, %c0_0] : memref<128x128xf32, #tpu.memory_space<vmem>>, vector<128x128xf32>
    %c0_1 = arith.constant 0 : index
    %c0_2 = arith.constant 0 : index
    %1 = vector.load %arg2[%c0_1, %c0_2] : memref<128x128xf32, #tpu.memory_space<vmem>>, vector<128x128xf32>
    %cst = arith.constant dense<0.000000e+00> : vector<128x128xf32>
    %2 = tpu.matmul %0, %1, %cst {dimension_numbers = #tpu.dot_dimension_numbers<[1], [0], [0], [1], [0, 0, 1, 1], [], []>} : vector<128x128xf32>, vector<128x128xf32>, vector<128x128xf32> -> vector<128x128xf32>
    %c0_3 = arith.constant 0 : index
    %c0_4 = arith.constant 0 : index
    %3 = vector.load %arg3[%c0_3, %c0_4] : memref<128x1xi32, #tpu.memory_space<vmem>>, vector<128x1xi32>
    %c0_i32 = arith.constant 0 : i32
    %4 = vector.broadcast %c0_i32 : i32 to vector<128x1xi32>
    %5 = arith.cmpi ne, %3, %4 : vector<128x1xi32>
    %6 = vector.shape_cast %5 : vector<128x1xi1> to vector<128x1xi1>
    %7 = vector.broadcast %6 : vector<128x1xi1> to vector<128x128xi1>
    %8 = arith.select %7, %2, %0 : vector<128x128xi1>, vector<128x128xf32>
    %c0_5 = arith.constant 0 : index
    %c0_6 = arith.constant 0 : index
    %9 = vector.load %arg4[%c0_5, %c0_6] : memref<128x128xf32, #tpu.memory_space<vmem>>, vector<128x128xf32>
    tpu.vector_store %arg4[%c0_5, %c0_6], %8 {strides = array<i32>} : memref<128x128xf32, #tpu.memory_space<vmem>>, vector<128x128xf32>,
    return
  }
  func.func @transform_0(%arg0: i32) -> (i32, i32) {
    %c0_i32 = arith.constant 0 : i32
    %c0_i32_0 = arith.constant 0 : i32
    return %arg0, %c0_i32 : i32, i32
  }
  func.func @transform_1(%arg0: i32) -> (i32, i32) {
    %c0_i32 = arith.constant 0 : i32
    %c0_i32_0 = arith.constant 0 : i32
    %c0_i32_1 = arith.constant 0 : i32
    return %c0_i32, %c0_i32_0 : i32, i32
  }
  func.func @transform_2(%arg0: i32) -> (i32, i32) {
    %c0_i32 = arith.constant 0 : i32
    %c0_i32_0 = arith.constant 0 : i32
    return %arg0, %c0_i32 : i32, i32
  }
  func.func @transform_3(%arg0: i32) -> (i32, i32) {
    %c0_i32 = arith.constant 0 : i32
    %c0_i32_0 = arith.constant 0 : i32
    return %arg0, %c0_i32 : i32, i32
  }
}

</mosaic_0001>

<llo_original>
// kernel: tpu_custom_call.1
$region0: #{tpu_custom_call.1}
  #allocation0 [shape = 'u32[]', space=smem, size = 0x4, offset = 0x4, fixed_abs, tag = 'smem constant byte address 0x4 - core index']
  #allocation1 [shape = 'u32[72,128]{1,0:T(1,128)}', space=vmem, size = 0x9000, scoped, tag = 'internal scratch']
  %s0 = inlined_call_operand.hbm [shape: f32[128,128], index: 0, kind: input, shape index: {}, may-alias: {0,3}]
  %s1 = inlined_call_operand.vmem [shape: f32[128,128], index: 1, kind: input, shape index: {}]
  %s2 = inlined_call_operand.vmem [shape: s32[128,1], index: 2, kind: input, shape index: {}]
  %s3 = inlined_call_operand.hbm [shape: f32[128,128], index: 3, kind: output, shape index: {}, may-alias: {0,3}]
  %s4 = sld [smem:[#allocation0]]
  $region26: #{tpu_custom_call.1} parent=0
    _
  %s6 = ssub.s32 1, %s4
  %s7 = scalar_select 0, %s6, %s4
  $region1: #{tpu_custom_call.1} parent=0
    #allocation2 [shape = 'u8[65536]{0}', space=vmem, size = 0x10000, scoped, tag = 'input window, operand 0, single buffered']
    #allocation3 [shape = 's32[1]{0}', space=sflag, size = 0x4, scoped, tag = 'scoped memory for tpu_custom_call.1']
    #allocation4 [shape = 's32[1]{0}', space=sflag, size = 0x4, scoped, tag = 'scoped memory for tpu_custom_call.1']
    #allocation5 [shape = 'u8[65536]{0}', space=vmem, size = 0x10000, scoped, tag = 'output window, operand 0, single buffered']
    %8 = vsyncpa [#allocation3], 0
    %9 = vsyncpa [#allocation4], 0
    // Predicated region
    $region2: #{tpu_custom_call.1} parent=1 // pred_check
      _
    $region3: #{tpu_custom_call.1} parent=1 // pred_check_branch
      %11 = sbr.rel (0) target = $region5
    $region4: #{tpu_custom_call.1} parent=1 // pred_region
      %13 = vsyncadd [#allocation3], 0
      %s14 = sshll.u32 %s0, 4
      %s15 = int_to_ptr.hbm [resolvable:$true] %s14
      %s16 = sshll.u32 [#allocation2], 4
      %s17 = int_to_ptr.vmem [resolvable:$true] %s16
      %22 = dma.hbm_to_vmem [thread:$0]  %s15, 2048, %s17, [#allocation3], 128, 128, 8
    $region5: #{tpu_custom_call.1} parent=1 // pred_fallthru
      _
    // Predicated region
    $region6: #{tpu_custom_call.1} parent=1 // pred_check
      _
    $region7: #{tpu_custom_call.1} parent=1 // pred_check_branch
      %24 = sbr.rel (0) target = $region9
    $region8: #{tpu_custom_call.1} parent=1 // pred_region
      _
    $region9: #{tpu_custom_call.1} parent=1 // pred_fallthru
      _
    // Predicated region
    $region10: #{tpu_custom_call.1} parent=1 // pred_check
      _
    $region11: #{tpu_custom_call.1} parent=1 // pred_check_branch
      %26 = sbr.rel (0) target = $region13
    $region12: #{tpu_custom_call.1} parent=1 // pred_region
      _
    $region13: #{tpu_custom_call.1} parent=1 // pred_fallthru
      _
    // Predicated region
    $region14: #{tpu_custom_call.1} parent=1 // pred_check
      _
    $region15: #{tpu_custom_call.1} parent=1 // pred_check_branch
      %28 = sbr.rel (0) target = $region17
    $region16: #{tpu_custom_call.1} parent=1 // pred_region
      %30 = dma.done [#allocation3], 2048
    $region17: #{tpu_custom_call.1} parent=1 // pred_fallthru
      _
    %v31 = vld [vmem:[#allocation2] sm:$0xff]
    %v32 = vld [vmem:[#allocation2 + $0x8] sm:$0xff]
    %v33 = vld [vmem:[#allocation2 + $0x10] sm:$0xff]
    %v34 = vld [vmem:[#allocation2 + $0x18] sm:$0xff]
    %v35 = vld [vmem:[#allocation2 + $0x20] sm:$0xff]
    %v36 = vld [vmem:[#allocation2 + $0x28] sm:$0xff]
    %v37 = vld [vmem:[#allocation2 + $0x30] sm:$0xff]
    %v38 = vld [vmem:[#allocation2 + $0x38] sm:$0xff]
    %v39 = vld [vmem:[#allocation2 + $0x40] sm:$0xff]
    %v40 = vld [vmem:[#allocation2 + $0x48] sm:$0xff]
    %v41 = vld [vmem:[#allocation2 + $0x50] sm:$0xff]
    %v42 = vld [vmem:[#allocation2 + $0x58] sm:$0xff]
    %v43 = vld [vmem:[#allocation2 + $0x60] sm:$0xff]
    %v44 = vld [vmem:[#allocation2 + $0x68] sm:$0xff]
    %v45 = vld [vmem:[#allocation2 + $0x70] sm:$0xff]
    %v46 = vld [vmem:[#allocation2 + $0x78] sm:$0xff]
    %v47 = vld [vmem:[%s1] sm:$0xff]
    %v48 = vld [vmem:[%s1 + $0x8] sm:$0xff]
    %v49 = vld [vmem:[%s1 + $0x10] sm:$0xff]
    %v50 = vld [vmem:[%s1 + $0x18] sm:$0xff]
    %v51 = vld [vmem:[%s1 + $0x20] sm:$0xff]
    %v52 = vld [vmem:[%s1 + $0x28] sm:$0xff]
    %v53 = vld [vmem:[%s1 + $0x30] sm:$0xff]
    %v54 = vld [vmem:[%s1 + $0x38] sm:$0xff]
    %v55 = vld [vmem:[%s1 + $0x40] sm:$0xff]
    %v56 = vld [vmem:[%s1 + $0x48] sm:$0xff]
    %v57 = vld [vmem:[%s1 + $0x50] sm:$0xff]
    %v58 = vld [vmem:[%s1 + $0x58] sm:$0xff]
    %v59 = vld [vmem:[%s1 + $0x60] sm:$0xff]
    %v60 = vld [vmem:[%s1 + $0x68] sm:$0xff]
    %v61 = vld [vmem:[%s1 + $0x70] sm:$0xff]
    %v62 = vld [vmem:[%s1 + $0x78] sm:$0xff]
    %63 = vmatpush.msra.mxu0 %v62
    %64 = vmatpush.msra.mxu0 %v61
    %65 = vmatpush.msra.mxu0 %v60
    %66 = vmatpush.msra.mxu0 %v59
    %67 = vmatpush.msra.mxu0 %v58
    %68 = vmatpush.msra.mxu0 %v57
    %69 = vmatpush.msra.mxu0 %v56
    %70 = vmatpush.msra.mxu0 %v55
    %71 = vmatpush.msra.mxu0 %v54
    %72 = vmatpush.msra.mxu0 %v53
    %73 = vmatpush.msra.mxu0 %v52
    %74 = vmatpush.msra.mxu0 %v51
    %75 = vmatpush.msra.mxu0 %v50
    %76 = vmatpush.msra.mxu0 %v49
    %77 = vmatpush.msra.mxu0 %v48
    %78 = vmatpush.msra.mxu0 %v47
    %79 = vmatmul.f32.gmra.mxu0 %v31
    %v80 = vpop.f32.mrf.mxu0
    %v81 = vadd.f32 0.0, %v80
    %82 = vmatmul.f32.gmra.mxu0 %v32
    %v83 = vpop.f32.mrf.mxu0
    %v84 = vadd.f32 0.0, %v83
    %85 = vmatmul.f32.gmra.mxu0 %v33
    %v86 = vpop.f32.mrf.mxu0
    %v87 = vadd.f32 0.0, %v86
    %88 = vmatmul.f32.gmra.mxu0 %v34
    %v89 = vpop.f32.mrf.mxu0
    %v90 = vadd.f32 0.0, %v89
    %91 = vmatmul.f32.gmra.mxu0 %v35
    %v92 = vpop.f32.mrf.mxu0
    %v93 = vadd.f32 0.0, %v92
    %94 = vmatmul.f32.gmra.mxu0 %v36
    %v95 = vpop.f32.mrf.mxu0
    %v96 = vadd.f32 0.0, %v95
    %97 = vmatmul.f32.gmra.mxu0 %v37
    %v98 = vpop.f32.mrf.mxu0
    %v99 = vadd.f32 0.0, %v98
    %100 = vmatmul.f32.gmra.mxu0 %v38
    %v101 = vpop.f32.mrf.mxu0
    %v102 = vadd.f32 0.0, %v101
    %103 = vmatmul.f32.gmra.mxu0 %v39
    %v104 = vpop.f32.mrf.mxu0
    %v105 = vadd.f32 0.0, %v104
    %106 = vmatmul.f32.gmra.mxu0 %v40
    %v107 = vpop.f32.mrf.mxu0
    %v108 = vadd.f32 0.0, %v107
    %109 = vmatmul.f32.gmra.mxu0 %v41
    %v110 = vpop.f32.mrf.mxu0
    %v111 = vadd.f32 0.0, %v110
    %112 = vmatmul.f32.gmra.mxu0 %v42
    %v113 = vpop.f32.mrf.mxu0
    %v114 = vadd.f32 0.0, %v113
    %115 = vmatmul.f32.gmra.mxu0 %v43
    %v116 = vpop.f32.mrf.mxu0
    %v117 = vadd.f32 0.0, %v116
    %118 = vmatmul.f32.gmra.mxu0 %v44
    %v119 = vpop.f32.mrf.mxu0
    %v120 = vadd.f32 0.0, %v119
    %121 = vmatmul.f32.gmra.mxu0 %v45
    %v122 = vpop.f32.mrf.mxu0
    %v123 = vadd.f32 0.0, %v122
    %124 = vmatmul.f32.gmra.mxu0 %v46
    %v125 = vpop.f32.mrf.mxu0
    %v126 = vadd.f32 0.0, %v125
    %127 = vdwg.mxu0
    %v128 = vld [vmem:[%s2] sm:$0xff]
    %v129 = vld [vmem:[%s2 + $0x8] sm:$0xff]
    %v130 = vld [vmem:[%s2 + $0x10] sm:$0xff]
    %v131 = vld [vmem:[%s2 + $0x18] sm:$0xff]
    %v132 = vld [vmem:[%s2 + $0x20] sm:$0xff]
    %v133 = vld [vmem:[%s2 + $0x28] sm:$0xff]
    %v134 = vld [vmem:[%s2 + $0x30] sm:$0xff]
    %v135 = vld [vmem:[%s2 + $0x38] sm:$0xff]
    %v136 = vld [vmem:[%s2 + $0x40] sm:$0xff]
    %v137 = vld [vmem:[%s2 + $0x48] sm:$0xff]
    %v138 = vld [vmem:[%s2 + $0x50] sm:$0xff]
    %v139 = vld [vmem:[%s2 + $0x58] sm:$0xff]
    %v140 = vld [vmem:[%s2 + $0x60] sm:$0xff]
    %v141 = vld [vmem:[%s2 + $0x68] sm:$0xff]
    %v142 = vld [vmem:[%s2 + $0x70] sm:$0xff]
    %v143 = vld [vmem:[%s2 + $0x78] sm:$0xff]
    %vm144 = vcmp.ne.s32.totalorder %v128, 0
    %vm145 = vcmp.ne.s32.totalorder %v129, 0
    %vm146 = vcmp.ne.s32.totalorder %v130, 0
    %vm147 = vcmp.ne.s32.totalorder %v131, 0
    %vm148 = vcmp.ne.s32.totalorder %v132, 0
    %vm149 = vcmp.ne.s32.totalorder %v133, 0
    %vm150 = vcmp.ne.s32.totalorder %v134, 0
    %vm151 = vcmp.ne.s32.totalorder %v135, 0
    %vm152 = vcmp.ne.s32.totalorder %v136, 0
    %vm153 = vcmp.ne.s32.totalorder %v137, 0
    %vm154 = vcmp.ne.s32.totalorder %v138, 0
    %vm155 = vcmp.ne.s32.totalorder %v139, 0
    %vm156 = vcmp.ne.s32.totalorder %v140, 0
    %vm157 = vcmp.ne.s32.totalorder %v141, 0
    %vm158 = vcmp.ne.s32.totalorder %v142, 0
    %vm159 = vcmp.ne.s32.totalorder %v143, 0
    %v160 = vsel %vm144, 1, 0
    %v161 = vsel %vm145, 1, 0
    %v162 = vsel %vm146, 1, 0
    %v163 = vsel %vm147, 1, 0
    %v164 = vsel %vm148, 1, 0
    %v165 = vsel %vm149, 1, 0
    %v166 = vsel %vm150, 1, 0
    %v167 = vsel %vm151, 1, 0
    %v168 = vsel %vm152, 1, 0
    %v169 = vsel %vm153, 1, 0
    %v170 = vsel %vm154, 1, 0
    %v171 = vsel %vm155, 1, 0
    %v172 = vsel %vm156, 1, 0
    %v173 = vsel %vm157, 1, 0
    %v174 = vsel %vm158, 1, 0
    %v175 = vsel %vm159, 1, 0
    %176 = vset.pattern.permute.xlu0 0
    %177 = vperm.xlu0 %176, %v160
    %v178 = vpop.permute.xlu0 %177
    %179 = vset.pattern.permute.xlu0 0
    %180 = vperm.xlu0 %179, %v161
    %v181 = vpop.permute.xlu0 %180
    %182 = vset.pattern.permute.xlu0 0
    %183 = vperm.xlu0 %182, %v162
    %v184 = vpop.permute.xlu0 %183
    %185 = vset.pattern.permute.xlu0 0
    %186 = vperm.xlu0 %185, %v163
    %v187 = vpop.permute.xlu0 %186
    %188 = vset.pattern.permute.xlu0 0
    %189 = vperm.xlu0 %188, %v164
    %v190 = vpop.permute.xlu0 %189
    %191 = vset.pattern.permute.xlu0 0
    %192 = vperm.xlu0 %191, %v165
    %v193 = vpop.permute.xlu0 %192
    %194 = vset.pattern.permute.xlu0 0
    %195 = vperm.xlu0 %194, %v166
    %v196 = vpop.permute.xlu0 %195
    %197 = vset.pattern.permute.xlu0 0
    %198 = vperm.xlu0 %197, %v167
    %v199 = vpop.permute.xlu0 %198
    %200 = vset.pattern.permute.xlu0 0
    %201 = vperm.xlu0 %200, %v168
    %v202 = vpop.permute.xlu0 %201
    %203 = vset.pattern.permute.xlu0 0
    %204 = vperm.xlu0 %203, %v169
    %v205 = vpop.permute.xlu0 %204
    %206 = vset.pattern.permute.xlu0 0
    %207 = vperm.xlu0 %206, %v170
    %v208 = vpop.permute.xlu0 %207
    %209 = vset.pattern.permute.xlu0 0
    %210 = vperm.xlu0 %209, %v171
    %v211 = vpop.permute.xlu0 %210
    %212 = vset.pattern.permute.xlu0 0
    %213 = vperm.xlu0 %212, %v172
    %v214 = vpop.permute.xlu0 %213
    %215 = vset.pattern.permute.xlu0 0
    %216 = vperm.xlu0 %215, %v173
    %v217 = vpop.permute.xlu0 %216
    %218 = vset.pattern.permute.xlu0 0
    %219 = vperm.xlu0 %218, %v174
    %v220 = vpop.permute.xlu0 %219
    %221 = vset.pattern.permute.xlu0 0
    %222 = vperm.xlu0 %221, %v175
    %v223 = vpop.permute.xlu0 %222
    %vm224 = vcmp.eq.s32.totalorder %v178, 1
    %vm225 = vcmp.eq.s32.totalorder %v181, 1
    %vm226 = vcmp.eq.s32.totalorder %v184, 1
    %vm227 = vcmp.eq.s32.totalorder %v187, 1
    %vm228 = vcmp.eq.s32.totalorder %v190, 1
    %vm229 = vcmp.eq.s32.totalorder %v193, 1
    %vm230 = vcmp.eq.s32.totalorder %v196, 1
    %vm231 = vcmp.eq.s32.totalorder %v199, 1
    %vm232 = vcmp.eq.s32.totalorder %v202, 1
    %vm233 = vcmp.eq.s32.totalorder %v205, 1
    %vm234 = vcmp.eq.s32.totalorder %v208, 1
    %vm235 = vcmp.eq.s32.totalorder %v211, 1
    %vm236 = vcmp.eq.s32.totalorder %v214, 1
    %vm237 = vcmp.eq.s32.totalorder %v217, 1
    %vm238 = vcmp.eq.s32.totalorder %v220, 1
    %vm239 = vcmp.eq.s32.totalorder %v223, 1
    %v240 = vsel %vm224, %v81, %v31
    %v241 = vsel %vm225, %v84, %v32
    %v242 = vsel %vm226, %v87, %v33
    %v243 = vsel %vm227, %v90, %v34
    %v244 = vsel %vm228, %v93, %v35
    %v245 = vsel %vm229, %v96, %v36
    %v246 = vsel %vm230, %v99, %v37
    %v247 = vsel %vm231, %v102, %v38
    %v248 = vsel %vm232, %v105, %v39
    %v249 = vsel %vm233, %v108, %v40
    %v250 = vsel %vm234, %v111, %v41
    %v251 = vsel %vm235, %v114, %v42
    %v252 = vsel %vm236, %v117, %v43
    %v253 = vsel %vm237, %v120, %v44
    %v254 = vsel %vm238, %v123, %v45
    %v255 = vsel %vm239, %v126, %v46
    %256 = vst [vmem:[#allocation5] sm:$0xff] %v240
    %257 = vst [vmem:[#allocation5 + $0x8] sm:$0xff] %v241
    %258 = vst [vmem:[#allocation5 + $0x10] sm:$0xff] %v242
    %259 = vst [vmem:[#allocation5 + $0x18] sm:$0xff] %v243
    %260 = vst [vmem:[#allocation5 + $0x20] sm:$0xff] %v244
    %261 = vst [vmem:[#allocation5 + $0x28] sm:$0xff] %v245
    %262 = vst [vmem:[#allocation5 + $0x30] sm:$0xff] %v246
    %263 = vst [vmem:[#allocation5 + $0x38] sm:$0xff] %v247
    %264 = vst [vmem:[#allocation5 + $0x40] sm:$0xff] %v248
    %265 = vst [vmem:[#allocation5 + $0x48] sm:$0xff] %v249
    %266 = vst [vmem:[#allocation5 + $0x50] sm:$0xff] %v250
    %267 = vst [vmem:[#allocation5 + $0x58] sm:$0xff] %v251
    %268 = vst [vmem:[#allocation5 + $0x60] sm:$0xff] %v252
    %269 = vst [vmem:[#allocation5 + $0x68] sm:$0xff] %v253
    %270 = vst [vmem:[#allocation5 + $0x70] sm:$0xff] %v254
    %271 = vst [vmem:[#allocation5 + $0x78] sm:$0xff] %v255
    // Predicated region
    $region18: #{tpu_custom_call.1} parent=1 // pred_check
      _
    $region19: #{tpu_custom_call.1} parent=1 // pred_check_branch
      %273 = sbr.rel (0) target = $region21
    $region20: #{tpu_custom_call.1} parent=1 // pred_region
      %275 = vsyncadd [#allocation4], 0
      %s276 = sshll.u32 [#allocation5], 4
      %s277 = int_to_ptr.vmem [resolvable:$true] %s276
      %s278 = sshll.u32 %s3, 4
      %s279 = int_to_ptr.hbm [resolvable:$true] %s278
      %284 = dma.vmem_to_hbm [thread:$0]  %s277, 2048, %s279, [#allocation4], 128, 128, 8
    $region21: #{tpu_custom_call.1} parent=1 // pred_fallthru
      _
    // Predicated region
    $region22: #{tpu_custom_call.1} parent=1 // pred_check
      _
    $region23: #{tpu_custom_call.1} parent=1 // pred_check_branch
      %286 = sbr.rel (0) target = $region25
    $region24: #{tpu_custom_call.1} parent=1 // pred_region
      %288 = dma.done [#allocation4], 2048
    $region25: #{tpu_custom_call.1} parent=1 // pred_fallthru
      _
    %289 = vsyncpa [#allocation3], 1
    %290 = vsyncpa [#allocation4], 1

</llo_original>
